<compile_context>
chip_gen: v5e
topology: v5e:2x2
jax: 0.10.0
libtpu: 0.0.40
codegen_flags: <defaults>
</compile_context>

<pallas_src>
import jax
import jax.numpy as jnp
from jax.experimental import pallas as pl
from jax.experimental.pallas import tpu as pltpu


def aggregator_kernel(curr_ref, alpha_ref, msg_ref, out_ref):
    # curr_ref:  (bn, D)      -- mailbox slot 0 (already sliced in the wrapper)
    # alpha_ref: (bn, M)      -- attention weights (squeezed)
    # msg_ref:   (bn, M * D)  -- messages, flattened lane-major
    # out_ref:   (bn, D)
    _, D = curr_ref.shape
    M = alpha_ref.shape[1]

    acc = curr_ref[...].astype(jnp.float32)          # residual update term
    alpha = alpha_ref[...].astype(jnp.float32)       # (bn, M)

    # Unrolled accumulation over the (small, static) mailbox dim M: keeps the
    # live set to ~2 (bn, D) tiles and stays entirely in the VPU slots
    # (no (bn, M, D) f32 intermediate, no cross-sublane reduction).
    for m in range(M):
        a_m = alpha[:, m:m + 1]                                      # (bn, 1)
        msg_m = msg_ref[:, m * D:(m + 1) * D].astype(jnp.float32)    # (bn, D)
        acc = acc + a_m * msg_m

    out_ref[...] = acc.astype(out_ref.dtype)


def _choose_block_n(N, M, D, itemsize, target_bytes=2 << 20):
    """Pick a node-tile size: msg tile ~2 MiB, sublane-aligned, >=4 grid steps."""
    cap = max(1, target_bytes // max(1, M * D * itemsize))
    if N >= 32:
        # Give the grid at least ~4 steps: software pipelining + both v7x TCs.
        cap = min(cap, max(8, N // 4))
    cap = max(1, min(cap, N))

    divisors = set()
    d = 1
    while d * d <= N:
        if N % d == 0:
            divisors.add(d)
            divisors.add(N // d)
        d += 1

    # Prefer sublane-aligned (multiple-of-8) blocks; full-extent is always legal.
    cands = [c for c in divisors if c % 8 == 0 and c <= cap]
    if not cands:
        cands = [c for c in divisors if c <= cap] or [N]
    return max(cands)


def aggregator_forward(curr_emb_mailbox, alpha, msg, *, block_n=None):
    """curr_emb_mailbox: (N, M, D); alpha: (N, M, 1); msg: (N, M, D) -> h: (N, D)."""
    N, M, D = msg.shape
    assert curr_emb_mailbox.shape == (N, M, D)
    assert alpha.shape == (N, M, 1)

    # Only mailbox slot 0 is used: slice before the kernel so we never DMA the
    # other M-1 slots from HBM into VMEM.
    curr2d = curr_emb_mailbox[:, 0, :]                # (N, D)
    # Flatten alpha: a (bn, M, 1) block would pad its minor (M, 1) dims to
    # (ceil(M/8)*8, 128) per node in VMEM; (N, M) pads M -> 128 only once.
    alpha2d = jnp.squeeze(alpha, axis=-1)             # (N, M)
    # Free reshape to a dense lane-major 2-D slab.
    msg2d = msg.reshape(N, M * D)                     # (N, M*D)

    itemsize = jnp.dtype(msg.dtype).itemsize
    bn = block_n if block_n is not None else _choose_block_n(N, M, D, itemsize)
    assert N % bn == 0, f"block_n={bn} must divide N={N}"
    grid = (N // bn,)

    # Memory-bound op: ~1 flop/byte.  Advisory only.
    bytes_accessed = (
        (N * M * D + 2 * N * D) * itemsize                # msg read + curr read + out write
        + N * M * jnp.dtype(alpha.dtype).itemsize         # alpha read
    )
    cost = pl.CostEstimate(
        flops=2 * N * M * D + N * D, transcendentals=0, bytes_accessed=bytes_accessed
    )

    return pl.pallas_call(
        aggregator_kernel,
        out_shape=jax.ShapeDtypeStruct((N, D), msg.dtype),
        grid_spec=pltpu.PrefetchScalarGridSpec(
            num_scalar_prefetch=0,
            grid=grid,
            in_specs=[
                pl.BlockSpec((bn, D), lambda i: (i, 0)),       # curr_emb slot 0
                pl.BlockSpec((bn, M), lambda i: (i, 0)),       # alpha (squeezed)
                pl.BlockSpec((bn, M * D), lambda i: (i, 0)),   # msg (flattened)
            ],
            out_specs=pl.BlockSpec((bn, D), lambda i: (i, 0)),
        ),
        compiler_params=pltpu.CompilerParams(
            dimension_semantics=("parallel",),                 # megacore-shardable
        ),
        cost_estimate=cost,
    )(curr2d, alpha2d, msg2d)


def _reference(curr_emb_mailbox, alpha, msg):
    curr_ref = curr_emb_mailbox[:, 0, :]
    nei_ref = jnp.squeeze(jnp.einsum("nmk,nmd->nkd", alpha, msg), axis=1)
    return curr_ref + nei_ref


if __name__ == "__main__":
    # Small, deterministic synthetic inputs consistent with the module's forward:
    # N nodes, mailbox size M (number of incoming messages), embedding dim D.
    N, M, D = 8, 4, 32
    key = jax.random.PRNGKey(0)
    k1, k2, k3 = jax.random.split(key, 3)

    curr_emb_mailbox = jax.random.normal(k1, (N, M, D), dtype=jnp.float32)
    alpha = jax.random.uniform(k2, (N, M, 1), dtype=jnp.float32)
    msg = jax.random.normal(k3, (N, M, D), dtype=jnp.float32)

    h = jax.block_until_ready(aggregator_forward(curr_emb_mailbox, alpha, msg))
    ref = _reference(curr_emb_mailbox, alpha, msg)
    assert h.shape == (N, D)
    assert jnp.allclose(h, ref, atol=1e-5, rtol=1e-5), "mismatch vs reference (small)"

    # Second (still small) check that exercises a multi-step grid and
    # lane-dense D=128 tiles.
    N2, M2, D2 = 64, 8, 128
    k4, k5, k6 = jax.random.split(jax.random.PRNGKey(1), 3)
    cm2 = jax.random.normal(k4, (N2, M2, D2), dtype=jnp.float32)
    al2 = jax.random.uniform(k5, (N2, M2, 1), dtype=jnp.float32)
    ms2 = jax.random.normal(k6, (N2, M2, D2), dtype=jnp.float32)

    h2 = jax.block_until_ready(aggregator_forward(cm2, al2, ms2))
    ref2 = _reference(cm2, al2, ms2)
    assert h2.shape == (N2, D2)
    assert jnp.allclose(h2, ref2, atol=1e-4, rtol=1e-4), "mismatch vs reference (grid)"

    print("KERNEL_OK")
</pallas_src>

<mosaic_0001>
module attributes {stable_mosaic.version = 11 : i64} {
  func.func @aggregator_kernel(%arg0: i32, %arg1: memref<8x32xf32, #tpu.memory_space<vmem>>, %arg2: memref<8x4xf32, #tpu.memory_space<vmem>>, %arg3: memref<8x128xf32, #tpu.memory_space<vmem>>, %arg4: memref<8x32xf32, #tpu.memory_space<vmem>>) attributes {dimension_semantics = [#tpu.dimension_semantics<parallel>], iteration_bounds = array<i64: 1>, scalar_prefetch = 0 : i64, scratch_operands = 0 : i64, tpu.core_type = #tpu.core_type<tc>, window_params = [{transform_indices = @transform_0, window_bounds = array<i64: 8, 32>}, {transform_indices = @transform_1, window_bounds = array<i64: 8, 4>}, {transform_indices = @transform_2, window_bounds = array<i64: 8, 128>}, {transform_indices = @transform_3, window_bounds = array<i64: 8, 32>}]} {
    %c0 = arith.constant 0 : index
    %c0_0 = arith.constant 0 : index
    %0 = vector.load %arg1[%c0, %c0_0] : memref<8x32xf32, #tpu.memory_space<vmem>>, vector<8x32xf32>
    %c0_1 = arith.constant 0 : index
    %c0_2 = arith.constant 0 : index
    %1 = vector.load %arg2[%c0_1, %c0_2] : memref<8x4xf32, #tpu.memory_space<vmem>>, vector<8x4xf32>
    %2 = vector.extract_strided_slice %1 {offsets = [0, 0], sizes = [8, 1], strides = [1, 1]} : vector<8x4xf32> to vector<8x1xf32>
    %c0_3 = arith.constant 0 : index
    %c0_4 = arith.constant 0 : index
    %3 = vector.load %arg3[%c0_3, %c0_4] : memref<8x128xf32, #tpu.memory_space<vmem>>, vector<8x32xf32>
    %4 = vector.broadcast %2 : vector<8x1xf32> to vector<8x32xf32>
    %5 = arith.mulf %4, %3 : vector<8x32xf32>
    %6 = arith.addf %0, %5 : vector<8x32xf32>
    %7 = vector.extract_strided_slice %1 {offsets = [0, 1], sizes = [8, 1], strides = [1, 1]} : vector<8x4xf32> to vector<8x1xf32>
    %c0_5 = arith.constant 0 : index
    %c32 = arith.constant 32 : index
    %8 = vector.load %arg3[%c0_5, %c32] : memref<8x128xf32, #tpu.memory_space<vmem>>, vector<8x32xf32>
    %9 = vector.broadcast %7 : vector<8x1xf32> to vector<8x32xf32>
    %10 = arith.mulf %9, %8 : vector<8x32xf32>
    %11 = arith.addf %6, %10 : vector<8x32xf32>
    %12 = vector.extract_strided_slice %1 {offsets = [0, 2], sizes = [8, 1], strides = [1, 1]} : vector<8x4xf32> to vector<8x1xf32>
    %c0_6 = arith.constant 0 : index
    %c64 = arith.constant 64 : index
    %13 = vector.load %arg3[%c0_6, %c64] : memref<8x128xf32, #tpu.memory_space<vmem>>, vector<8x32xf32>
    %14 = vector.broadcast %12 : vector<8x1xf32> to vector<8x32xf32>
    %15 = arith.mulf %14, %13 : vector<8x32xf32>
    %16 = arith.addf %11, %15 : vector<8x32xf32>
    %17 = vector.extract_strided_slice %1 {offsets = [0, 3], sizes = [8, 1], strides = [1, 1]} : vector<8x4xf32> to vector<8x1xf32>
    %c0_7 = arith.constant 0 : index
    %c96 = arith.constant 96 : index
    %18 = vector.load %arg3[%c0_7, %c96] : memref<8x128xf32, #tpu.memory_space<vmem>>, vector<8x32xf32>
    %19 = vector.broadcast %17 : vector<8x1xf32> to vector<8x32xf32>
    %20 = arith.mulf %19, %18 : vector<8x32xf32>
    %21 = arith.addf %16, %20 : vector<8x32xf32>
    %c0_8 = arith.constant 0 : index
    %c0_9 = arith.constant 0 : index
    %22 = vector.load %arg4[%c0_8, %c0_9] : memref<8x32xf32, #tpu.memory_space<vmem>>, vector<8x32xf32>
    tpu.vector_store %arg4[%c0_8, %c0_9], %21 {strides = array<i32>} : memref<8x32xf32, #tpu.memory_space<vmem>>, vector<8x32xf32>,
    return
  }
  func.func @transform_0(%arg0: i32) -> (i32, i32) {
    %c0_i32 = arith.constant 0 : i32
    %c0_i32_0 = arith.constant 0 : i32
    return %arg0, %c0_i32 : i32, i32
  }
  func.func @transform_1(%arg0: i32) -> (i32, i32) {
    %c0_i32 = arith.constant 0 : i32
    %c0_i32_0 = arith.constant 0 : i32
    return %arg0, %c0_i32 : i32, i32
  }
  func.func @transform_2(%arg0: i32) -> (i32, i32) {
    %c0_i32 = arith.constant 0 : i32
    %c0_i32_0 = arith.constant 0 : i32
    return %arg0, %c0_i32 : i32, i32
  }
  func.func @transform_3(%arg0: i32) -> (i32, i32) {
    %c0_i32 = arith.constant 0 : i32
    %c0_i32_0 = arith.constant 0 : i32
    return %arg0, %c0_i32 : i32, i32
  }
}

</mosaic_0001>

<llo_original>
// kernel: tpu_custom_call.1
$region0: #{tpu_custom_call.1}
  #allocation0 [shape = 'u32[]', space=smem, size = 0x4, offset = 0x4, fixed_abs, tag = 'smem constant byte address 0x4 - core index']
  #allocation1 [shape = 'u32[72,128]{1,0:T(1,128)}', space=vmem, size = 0x9000, scoped, tag = 'internal scratch']
  %s0 = inlined_call_operand.vmem [shape: f32[8,32], index: 0, kind: input, shape index: {}]
  %s1 = inlined_call_operand.vmem [shape: f32[8,4], index: 1, kind: input, shape index: {}]
  %s2 = inlined_call_operand.hbm [shape: f32[8,128], index: 2, kind: input, shape index: {}]
  %s3 = inlined_call_operand.hbm [shape: f32[8,32], index: 3, kind: output, shape index: {}]
  %s4 = sld [smem:[#allocation0]]
  $region26: #{tpu_custom_call.1} parent=0
    _
  %s6 = ssub.s32 1, %s4
  %s7 = scalar_select 0, %s6, %s4
  $region1: #{tpu_custom_call.1} parent=0
    #allocation2 [shape = 'u8[4096]{0}', space=vmem, size = 0x1000, scoped, tag = 'input window, operand 2, single buffered']
    #allocation3 [shape = 's32[1]{0}', space=sflag, size = 0x4, scoped, tag = 'scoped memory for tpu_custom_call.1']
    #allocation4 [shape = 's32[1]{0}', space=sflag, size = 0x4, scoped, tag = 'scoped memory for tpu_custom_call.1']
    #allocation5 [shape = 'u8[4096]{0}', space=vmem, size = 0x1000, scoped, tag = 'output window, operand 0, single buffered']
    %8 = vsyncpa [#allocation3], 0
    %9 = vsyncpa [#allocation4], 0
    // Predicated region
    $region2: #{tpu_custom_call.1} parent=1 // pred_check
      _
    $region3: #{tpu_custom_call.1} parent=1 // pred_check_branch
      %11 = sbr.rel (0) target = $region5
    $region4: #{tpu_custom_call.1} parent=1 // pred_region
      _
    $region5: #{tpu_custom_call.1} parent=1 // pred_fallthru
      _
    // Predicated region
    $region6: #{tpu_custom_call.1} parent=1 // pred_check
      _
    $region7: #{tpu_custom_call.1} parent=1 // pred_check_branch
      %13 = sbr.rel (0) target = $region9
    $region8: #{tpu_custom_call.1} parent=1 // pred_region
      _
    $region9: #{tpu_custom_call.1} parent=1 // pred_fallthru
      _
    // Predicated region
    $region10: #{tpu_custom_call.1} parent=1 // pred_check
      _
    $region11: #{tpu_custom_call.1} parent=1 // pred_check_branch
      %15 = sbr.rel (0) target = $region13
    $region12: #{tpu_custom_call.1} parent=1 // pred_region
      %17 = vsyncadd [#allocation3], 0
      %s19 = sshll.u32 %s2, 4
      %s20 = int_to_ptr.hbm [resolvable:$true] %s19
      %s21 = sshll.u32 [#allocation2], 4
      %s22 = int_to_ptr.vmem [resolvable:$true] %s21
      %24 = dma.hbm_to_vmem [thread:$0]  %s20, 128, %s22, [#allocation3]
    $region13: #{tpu_custom_call.1} parent=1 // pred_fallthru
      _
    // Predicated region
    $region14: #{tpu_custom_call.1} parent=1 // pred_check
      _
    $region15: #{tpu_custom_call.1} parent=1 // pred_check_branch
      %26 = sbr.rel (0) target = $region17
    $region16: #{tpu_custom_call.1} parent=1 // pred_region
      %28 = dma.done [#allocation3], 128
    $region17: #{tpu_custom_call.1} parent=1 // pred_fallthru
      _
    %v29 = vld [vmem:[%s0] sm:$0xff]
    %v30 = vld [vmem:[%s1] sm:$0xff]
    %v31 = vld [vmem:[#allocation2] sm:$0xff]
    %33 = vset.pattern.permute.xlu0 0
    %34 = vperm.xlu0 %33, %v30
    %v35 = vpop.permute.xlu0 %34
    %v37 = vmul.f32 %v35, %v31
    %v38 = vadd.f32 %v29, %v37
    %39 = vset.pattern.permute.xlu0 1
    %40 = vperm.xlu0 %39, %v30
    %v41 = vpop.permute.xlu0 %40
    %v43 = vmul.f32 %v41, %v31
    %45 = vrot.lane.b32.xlu0 %v43, 96
    %v46 = vpop.permute.xlu0 %45
    %v48 = vadd.f32 %v38, %v46
    %49 = vset.pattern.permute.xlu0 2
    %50 = vperm.xlu0 %49, %v30
    %v51 = vpop.permute.xlu0 %50
    %v53 = vmul.f32 %v51, %v31
    %55 = vrot.lane.b32.xlu0 %v53, 64
    %v56 = vpop.permute.xlu0 %55
    %v58 = vadd.f32 %v48, %v56
    %59 = vset.pattern.permute.xlu0 3
    %60 = vperm.xlu0 %59, %v30
    %v61 = vpop.permute.xlu0 %60
    %v63 = vmul.f32 %v61, %v31
    %65 = vrot.lane.b32.xlu0 %v63, 32
    %v66 = vpop.permute.xlu0 %65
    %v68 = vadd.f32 %v58, %v66
    %vm69 = vcmask 261120
    %70 = vst.msk [vmem:[#allocation5] sm:$0xff] %vm69, %v68
    // Predicated region
    $region18: #{tpu_custom_call.1} parent=1 // pred_check
      _
    $region19: #{tpu_custom_call.1} parent=1 // pred_check_branch
      %72 = sbr.rel (0) target = $region21
    $region20: #{tpu_custom_call.1} parent=1 // pred_region
      %74 = vsyncadd [#allocation4], 0
      %s76 = sshll.u32 [#allocation5], 4
      %s77 = int_to_ptr.vmem [resolvable:$true] %s76
      %s78 = sshll.u32 %s3, 4
      %s79 = int_to_ptr.hbm [resolvable:$true] %s78
      %81 = dma.vmem_to_hbm [thread:$0]  %s77, 128, %s79, [#allocation4]
    $region21: #{tpu_custom_call.1} parent=1 // pred_fallthru
      _
    // Predicated region
    $region22: #{tpu_custom_call.1} parent=1 // pred_check
      _
    $region23: #{tpu_custom_call.1} parent=1 // pred_check_branch
      %83 = sbr.rel (0) target = $region25
    $region24: #{tpu_custom_call.1} parent=1 // pred_region
      %85 = dma.done [#allocation4], 128
    $region25: #{tpu_custom_call.1} parent=1 // pred_fallthru
      _
    %86 = vsyncpa [#allocation3], 1
    %87 = vsyncpa [#allocation4], 1

</llo_original>
